<compile_context>
chip_gen: v5e
topology: v5e:2x2
jax: 0.10.0
libtpu: 0.0.40
codegen_flags: <defaults>
</compile_context>

<pallas_src>
import functools
import math

import jax
import jax.numpy as jnp
from jax import lax
from jax.experimental import pallas as pl
from jax.experimental.pallas import tpu as pltpu


# ---------------------------------------------------------------------------
# GELU variants (computed in f32 on the VPU / EUP)
# ---------------------------------------------------------------------------
def _gelu_exact(x):
    # PyTorch nn.GELU() default: exact erf-based GELU.
    inv_sqrt2 = jnp.float32(1.0 / math.sqrt(2.0))
    return jnp.float32(0.5) * x * (jnp.float32(1.0) + lax.erf(x * inv_sqrt2))


def _gelu_tanh(x):
    # tanh approximation: transcendental goes to the EUP slot (near-free).
    c = jnp.float32(math.sqrt(2.0 / math.pi))
    return jnp.float32(0.5) * x * (
        jnp.float32(1.0) + jnp.tanh(c * (x + jnp.float32(0.044715) * x * x * x)))


# ---------------------------------------------------------------------------
# Kernel
# ---------------------------------------------------------------------------
def mlp_kernel(x_ref, w1_ref, b1_ref, w3_ref, b3_ref, w4_ref, b4_ref, o_ref,
               *, approx_gelu):
    gelu = _gelu_tanh if approx_gelu else _gelu_exact

    # fc1 + GELU (MXU f32 accumulation; K = input_size, unpadded)
    h = jnp.dot(x_ref[...], w1_ref[...], preferred_element_type=jnp.float32)
    h = gelu(h + b1_ref[...])

    # fc3 + GELU
    h = jnp.dot(h.astype(w3_ref.dtype), w3_ref[...],
                preferred_element_type=jnp.float32)
    h = gelu(h + b3_ref[...])

    # fc4
    out = jnp.dot(h.astype(w4_ref.dtype), w4_ref[...],
                  preferred_element_type=jnp.float32)
    o_ref[...] = (out + b4_ref[...]).astype(o_ref.dtype)


# ---------------------------------------------------------------------------
# Wrapper helpers
# ---------------------------------------------------------------------------
def _round_up(n, m):
    return ((n + m - 1) // m) * m


def _cdiv(a, b):
    return -(-a // b)


def _pad2d(a, rows, cols):
    pr, pc = rows - a.shape[0], cols - a.shape[1]
    if pr or pc:
        a = jnp.pad(a, ((0, pr), (0, pc)))
    return a


def prepare_params(w1, b1, w3, b3, w4, b4, *, compute_dtype=jnp.bfloat16):
    """Pad feature dims to multiples of 128 and cast ONCE (hoisted out of the
    per-call path). w1's K dim (input_size) is left unpadded on purpose so the
    streamed x tile stays narrow."""
    in_dim, h1 = w1.shape
    h2 = w3.shape[1]
    nc = w4.shape[1]
    h1_p = _round_up(h1, 128)
    h2_p = _round_up(h2, 128)
    nc_p = _round_up(nc, 128)

    w1p = _pad2d(w1, in_dim, h1_p).astype(compute_dtype)
    w3p = _pad2d(w3, h1_p, h2_p).astype(compute_dtype)
    w4p = _pad2d(w4, h2_p, nc_p).astype(compute_dtype)
    # Biases stay f32 (added to the f32 accumulator).
    b1p = _pad2d(b1, 1, h1_p).astype(jnp.float32)
    b3p = _pad2d(b3, 1, h2_p).astype(jnp.float32)
    b4p = _pad2d(b4, 1, nc_p).astype(jnp.float32)
    return (w1p, b1p, w3p, b3p, w4p, b4p)


@functools.partial(jax.jit,
                   static_argnames=("num_classes", "tile_b", "approx_gelu"))
def mlp_forward(x, params, *, num_classes, tile_b=None, approx_gelu=False):
    """x: [B, input_size]; params: output of prepare_params (pre-padded/cast).

    Everything here (pad x, pallas_call, slice) fuses under one jit."""
    w1p, b1p, w3p, b3p, w4p, b4p = params
    compute_dtype = w1p.dtype
    B, in_dim = x.shape
    nc_p = w4p.shape[1]
    out_dtype = x.dtype

    # Sublane packing: bf16 packs 16 rows per vreg sublane group.
    sub = 16 if compute_dtype == jnp.bfloat16 else 8

    if tile_b is None:
        cap = 1024  # amortize ~0.35us/step overhead; VMEM cost is tiny.
        B_a = _round_up(B, sub)
        # >=2 grid steps once the padded batch reaches 256 rows so the
        # "parallel" batch axis shards across both v7x TensorCores.
        num_steps = max(_cdiv(B_a, cap), 2 if B_a >= 256 else 1)
        tile_b = _round_up(_cdiv(B, num_steps), sub)
    else:
        num_steps = _cdiv(B, tile_b)
    B_p = tile_b * num_steps  # batch padding waste bounded by ~sub*num_steps rows

    xp = _pad2d(x, B_p, in_dim).astype(compute_dtype)

    full_spec = lambda shape: pl.BlockSpec(shape, lambda i: (0, 0))

    out_p = pl.pallas_call(
        functools.partial(mlp_kernel, approx_gelu=approx_gelu),
        out_shape=jax.ShapeDtypeStruct((B_p, nc_p), out_dtype),
        grid_spec=pltpu.PrefetchScalarGridSpec(
            num_scalar_prefetch=0,
            grid=(num_steps,),
            in_specs=[
                # x tile: full (unpadded) contraction dim, batch-tiled rows.
                pl.BlockSpec((tile_b, in_dim), lambda i: (i, 0)),
                full_spec(w1p.shape),
                full_spec(b1p.shape),
                full_spec(w3p.shape),
                full_spec(b3p.shape),
                full_spec(w4p.shape),
                full_spec(b4p.shape),
            ],
            out_specs=pl.BlockSpec((tile_b, nc_p), lambda i: (i, 0)),
        ),
        compiler_params=pltpu.CompilerParams(
            dimension_semantics=("parallel",),
        ),
    )(xp, w1p, b1p, w3p, b3p, w4p, b4p)

    return out_p[:B, :num_classes]


# ---------------------------------------------------------------------------
# Synthetic params (mimic PyTorch nn.Linear default init), pre-transposed.
# ---------------------------------------------------------------------------
def init_params(key, input_size, hidden1, hidden2, num_classes):
    ks = jax.random.split(key, 6)

    def linear(kw, kb, fan_in, fan_out):
        bound = 1.0 / math.sqrt(fan_in)
        w = jax.random.uniform(kw, (fan_in, fan_out), jnp.float32, -bound, bound)
        b = jax.random.uniform(kb, (1, fan_out), jnp.float32, -bound, bound)
        return w, b

    w1, b1 = linear(ks[0], ks[1], input_size, hidden1)
    w3, b3 = linear(ks[2], ks[3], hidden1, hidden2)
    w4, b4 = linear(ks[4], ks[5], hidden2, num_classes)
    return w1, b1, w3, b3, w4, b4


if __name__ == "__main__":
    parameters = {
        "input_size": 32,
        "hidden_size1": 64,
        "hidden_size2": 48,
        "num_classes": 16,
    }
    batch = 16

    key = jax.random.PRNGKey(0)
    k_x, k_p = jax.random.split(key)

    x = jax.random.normal(k_x, (batch, parameters["input_size"]), jnp.float32)
    w1, b1, w3, b3, w4, b4 = init_params(
        k_p,
        parameters["input_size"],
        parameters["hidden_size1"],
        parameters["hidden_size2"],
        parameters["num_classes"],
    )

    # Plain-JAX reference (exact-erf GELU, same as PyTorch nn.GELU default).
    def ref(x):
        h = jax.nn.gelu(x @ w1 + b1, approximate=False)
        h = jax.nn.gelu(h @ w3 + b3, approximate=False)
        return h @ w4 + b4

    expected = ref(x)
    nc = parameters["num_classes"]

    # --- f32 operands + exact GELU: tight-tolerance correctness check -------
    params_f32 = prepare_params(w1, b1, w3, b3, w4, b4,
                                compute_dtype=jnp.float32)
    out = jax.block_until_ready(
        mlp_forward(x, params_f32, num_classes=nc))
    assert out.shape == (batch, nc)
    assert jnp.allclose(out, expected, atol=1e-5, rtol=1e-5)

    # --- default production path: bf16 operands (f32 accumulation) ----------
    params_bf16 = prepare_params(w1, b1, w3, b3, w4, b4)  # bf16 default
    out_bf16 = jax.block_until_ready(
        mlp_forward(x, params_bf16, num_classes=nc))
    assert jnp.allclose(out_bf16, expected, atol=3e-2, rtol=3e-2)

    # --- optional tanh-approx GELU (EUP path); opt-in, small deviation -------
    out_tanh = jax.block_until_ready(
        mlp_forward(x, params_f32, num_classes=nc, approx_gelu=True))
    assert jnp.allclose(out_tanh, expected, atol=5e-2, rtol=5e-2)

    print("KERNEL_OK")
</pallas_src>

<mosaic_0001>
module attributes {stable_mosaic.version = 11 : i64} {
  func.func @mlp_kernel(%arg0: i32, %arg1: memref<16x32xf32, #tpu.memory_space<vmem>>, %arg2: memref<32x128xf32, #tpu.memory_space<vmem>>, %arg3: memref<1x128xf32, #tpu.memory_space<vmem>>, %arg4: memref<128x128xf32, #tpu.memory_space<vmem>>, %arg5: memref<1x128xf32, #tpu.memory_space<vmem>>, %arg6: memref<128x128xf32, #tpu.memory_space<vmem>>, %arg7: memref<1x128xf32, #tpu.memory_space<vmem>>, %arg8: memref<16x128xf32, #tpu.memory_space<vmem>>) attributes {dimension_semantics = [#tpu.dimension_semantics<parallel>], iteration_bounds = array<i64: 1>, scalar_prefetch = 0 : i64, scratch_operands = 0 : i64, tpu.core_type = #tpu.core_type<tc>, window_params = [{transform_indices = @transform_0, window_bounds = array<i64: 16, 32>}, {pipeline_mode = #tpu.pipeline_mode<synchronous>, transform_indices = @transform_1, window_bounds = array<i64: 32, 128>}, {pipeline_mode = #tpu.pipeline_mode<synchronous>, transform_indices = @transform_2, window_bounds = array<i64: 1, 128>}, {pipeline_mode = #tpu.pipeline_mode<synchronous>, transform_indices = @transform_3, window_bounds = array<i64: 128, 128>}, {pipeline_mode = #tpu.pipeline_mode<synchronous>, transform_indices = @transform_4, window_bounds = array<i64: 1, 128>}, {pipeline_mode = #tpu.pipeline_mode<synchronous>, transform_indices = @transform_5, window_bounds = array<i64: 128, 128>}, {pipeline_mode = #tpu.pipeline_mode<synchronous>, transform_indices = @transform_6, window_bounds = array<i64: 1, 128>}, {transform_indices = @transform_7, window_bounds = array<i64: 16, 128>}]} {
    %c0 = arith.constant 0 : index
    %c0_0 = arith.constant 0 : index
    %0 = vector.load %arg1[%c0, %c0_0] : memref<16x32xf32, #tpu.memory_space<vmem>>, vector<16x32xf32>
    %c0_1 = arith.constant 0 : index
    %c0_2 = arith.constant 0 : index
    %1 = vector.load %arg2[%c0_1, %c0_2] : memref<32x128xf32, #tpu.memory_space<vmem>>, vector<32x128xf32>
    %cst = arith.constant dense<0.000000e+00> : vector<16x128xf32>
    %2 = tpu.matmul %0, %1, %cst {dimension_numbers = #tpu.dot_dimension_numbers<[1], [0], [0], [1], [0, 0, 1, 1], [], []>} : vector<16x32xf32>, vector<32x128xf32>, vector<16x128xf32> -> vector<16x128xf32>
    %c0_3 = arith.constant 0 : index
    %c0_4 = arith.constant 0 : index
    %3 = vector.load %arg3[%c0_3, %c0_4] : memref<1x128xf32, #tpu.memory_space<vmem>>, vector<1x128xf32>
    %4 = vector.broadcast %3 : vector<1x128xf32> to vector<16x128xf32>
    %5 = arith.addf %2, %4 : vector<16x128xf32>
    %cst_5 = arith.constant 5.000000e-01 : f32
    %6 = vector.broadcast %cst_5 : f32 to vector<16x128xf32>
    %7 = arith.mulf %6, %5 : vector<16x128xf32>
    %cst_6 = arith.constant 0.707106769 : f32
    %8 = vector.broadcast %cst_6 : f32 to vector<16x128xf32>
    %9 = arith.mulf %5, %8 : vector<16x128xf32>
    %10 = math.erf %9 : vector<16x128xf32>
    %cst_7 = arith.constant 1.000000e+00 : f32
    %11 = vector.broadcast %cst_7 : f32 to vector<16x128xf32>
    %12 = arith.addf %11, %10 : vector<16x128xf32>
    %13 = arith.mulf %7, %12 : vector<16x128xf32>
    %c0_8 = arith.constant 0 : index
    %c0_9 = arith.constant 0 : index
    %14 = vector.load %arg4[%c0_8, %c0_9] : memref<128x128xf32, #tpu.memory_space<vmem>>, vector<128x128xf32>
    %cst_10 = arith.constant dense<0.000000e+00> : vector<16x128xf32>
    %15 = tpu.matmul %13, %14, %cst_10 {dimension_numbers = #tpu.dot_dimension_numbers<[1], [0], [0], [1], [0, 0, 1, 1], [], []>} : vector<16x128xf32>, vector<128x128xf32>, vector<16x128xf32> -> vector<16x128xf32>
    %c0_11 = arith.constant 0 : index
    %c0_12 = arith.constant 0 : index
    %16 = vector.load %arg5[%c0_11, %c0_12] : memref<1x128xf32, #tpu.memory_space<vmem>>, vector<1x128xf32>
    %17 = vector.broadcast %16 : vector<1x128xf32> to vector<16x128xf32>
    %18 = arith.addf %15, %17 : vector<16x128xf32>
    %cst_13 = arith.constant 5.000000e-01 : f32
    %19 = vector.broadcast %cst_13 : f32 to vector<16x128xf32>
    %20 = arith.mulf %19, %18 : vector<16x128xf32>
    %cst_14 = arith.constant 0.707106769 : f32
    %21 = vector.broadcast %cst_14 : f32 to vector<16x128xf32>
    %22 = arith.mulf %18, %21 : vector<16x128xf32>
    %23 = math.erf %22 : vector<16x128xf32>
    %cst_15 = arith.constant 1.000000e+00 : f32
    %24 = vector.broadcast %cst_15 : f32 to vector<16x128xf32>
    %25 = arith.addf %24, %23 : vector<16x128xf32>
    %26 = arith.mulf %20, %25 : vector<16x128xf32>
    %c0_16 = arith.constant 0 : index
    %c0_17 = arith.constant 0 : index
    %27 = vector.load %arg6[%c0_16, %c0_17] : memref<128x128xf32, #tpu.memory_space<vmem>>, vector<128x128xf32>
    %cst_18 = arith.constant dense<0.000000e+00> : vector<16x128xf32>
    %28 = tpu.matmul %26, %27, %cst_18 {dimension_numbers = #tpu.dot_dimension_numbers<[1], [0], [0], [1], [0, 0, 1, 1], [], []>} : vector<16x128xf32>, vector<128x128xf32>, vector<16x128xf32> -> vector<16x128xf32>
    %c0_19 = arith.constant 0 : index
    %c0_20 = arith.constant 0 : index
    %29 = vector.load %arg7[%c0_19, %c0_20] : memref<1x128xf32, #tpu.memory_space<vmem>>, vector<1x128xf32>
    %30 = vector.broadcast %29 : vector<1x128xf32> to vector<16x128xf32>
    %31 = arith.addf %28, %30 : vector<16x128xf32>
    %c0_21 = arith.constant 0 : index
    %c0_22 = arith.constant 0 : index
    %32 = vector.load %arg8[%c0_21, %c0_22] : memref<16x128xf32, #tpu.memory_space<vmem>>, vector<16x128xf32>
    tpu.vector_store %arg8[%c0_21, %c0_22], %31 {strides = array<i32>} : memref<16x128xf32, #tpu.memory_space<vmem>>, vector<16x128xf32>,
    return
  }
  func.func @transform_0(%arg0: i32) -> (i32, i32) {
    %c0_i32 = arith.constant 0 : i32
    %c0_i32_0 = arith.constant 0 : i32
    return %arg0, %c0_i32 : i32, i32
  }
  func.func @transform_1(%arg0: i32) -> (i32, i32) {
    %c0_i32 = arith.constant 0 : i32
    %c0_i32_0 = arith.constant 0 : i32
    %c0_i32_1 = arith.constant 0 : i32
    return %c0_i32, %c0_i32_0 : i32, i32
  }
  func.func @transform_2(%arg0: i32) -> (i32, i32) {
    %c0_i32 = arith.constant 0 : i32
    %c0_i32_0 = arith.constant 0 : i32
    %c0_i32_1 = arith.constant 0 : i32
    return %c0_i32, %c0_i32_0 : i32, i32
  }
  func.func @transform_3(%arg0: i32) -> (i32, i32) {
    %c0_i32 = arith.constant 0 : i32
    %c0_i32_0 = arith.constant 0 : i32
    %c0_i32_1 = arith.constant 0 : i32
    return %c0_i32, %c0_i32_0 : i32, i32
  }
  func.func @transform_4(%arg0: i32) -> (i32, i32) {
    %c0_i32 = arith.constant 0 : i32
    %c0_i32_0 = arith.constant 0 : i32
    %c0_i32_1 = arith.constant 0 : i32
    return %c0_i32, %c0_i32_0 : i32, i32
  }
  func.func @transform_5(%arg0: i32) -> (i32, i32) {
    %c0_i32 = arith.constant 0 : i32
    %c0_i32_0 = arith.constant 0 : i32
    %c0_i32_1 = arith.constant 0 : i32
    return %c0_i32, %c0_i32_0 : i32, i32
  }
  func.func @transform_6(%arg0: i32) -> (i32, i32) {
    %c0_i32 = arith.constant 0 : i32
    %c0_i32_0 = arith.constant 0 : i32
    %c0_i32_1 = arith.constant 0 : i32
    return %c0_i32, %c0_i32_0 : i32, i32
  }
  func.func @transform_7(%arg0: i32) -> (i32, i32) {
    %c0_i32 = arith.constant 0 : i32
    %c0_i32_0 = arith.constant 0 : i32
    return %arg0, %c0_i32 : i32, i32
  }
}

</mosaic_0001>

<llo_original>
// kernel: mlp_forward.1
$region0: #{mlp_forward.1}
  #allocation0 [shape = 'u32[]', space=smem, size = 0x4, offset = 0x4, fixed_abs, tag = 'smem constant byte address 0x4 - core index']
  #allocation1 [shape = 'u32[72,128]{1,0:T(1,128)}', space=vmem, size = 0x9000, scoped, tag = 'internal scratch']
  %s0 = inlined_call_operand.hbm [shape: f32[16,32], index: 0, kind: input, shape index: {}]
  %s1 = inlined_call_operand.hbm [shape: f32[32,128], index: 1, kind: input, shape index: {}]
  %s2 = inlined_call_operand.vmem [shape: f32[1,128], index: 2, kind: input, shape index: {}]
  %s3 = inlined_call_operand.hbm [shape: f32[128,128], index: 3, kind: input, shape index: {}]
  %s4 = inlined_call_operand.vmem [shape: f32[1,128], index: 4, kind: input, shape index: {}]
  %s5 = inlined_call_operand.hbm [shape: f32[128,128], index: 5, kind: input, shape index: {}]
  %s6 = inlined_call_operand.vmem [shape: f32[1,128], index: 6, kind: input, shape index: {}]
  %s7 = inlined_call_operand.hbm [shape: f32[16,128], index: 7, kind: output, shape index: {}]
  %s8 = sld [smem:[#allocation0]]
  $region54: #{mlp_forward.1} parent=0
    _
  %s10 = ssub.s32 1, %s8
  %s11 = scalar_select 0, %s10, %s8
  $region1: #{mlp_forward.1} parent=0
    #allocation2 [shape = 'u8[8192]{0}', space=vmem, size = 0x2000, scoped, tag = 'input window, operand 0, single buffered']
    #allocation3 [shape = 's32[1]{0}', space=sflag, size = 0x4, scoped, tag = 'scoped memory for mlp_forward.1']
    #allocation4 [shape = 's32[1]{0}', space=sflag, size = 0x4, scoped, tag = 'scoped memory for mlp_forward.1']
    #allocation5 [shape = 'u8[16384]{0}', space=vmem, size = 0x4000, scoped, tag = 'input window, operand 1, single buffered']
    #allocation6 [shape = 's32[1]{0}', space=sflag, size = 0x4, scoped, tag = 'scoped memory for mlp_forward.1']
    #allocation7 [shape = 'u8[65536]{0}', space=vmem, size = 0x10000, scoped, tag = 'input window, operand 3, single buffered']
    #allocation8 [shape = 'u8[65536]{0}', space=vmem, size = 0x10000, scoped, tag = 'input window, operand 5, single buffered']
    #allocation9 [shape = 's32[1]{0}', space=sflag, size = 0x4, scoped, tag = 'scoped memory for mlp_forward.1']
    #allocation10 [shape = 'u8[8192]{0}', space=vmem, size = 0x2000, scoped, tag = 'output window, operand 0, single buffered']
    %12 = vsyncpa [#allocation3], 0
    %13 = vsyncpa [#allocation6], 0
    %14 = vsyncpa [#allocation9], 0
    %15 = vsyncpa [#allocation4], 0
    // Predicated region
    $region2: #{mlp_forward.1} parent=1 // pred_check
      _
    $region3: #{mlp_forward.1} parent=1 // pred_check_branch
      %17 = sbr.rel (0) target = $region5
    $region4: #{mlp_forward.1} parent=1 // pred_region
      %19 = vsyncadd [#allocation3], 0
      %s20 = sshll.u32 %s0, 4
      %s21 = int_to_ptr.hbm [resolvable:$true] %s20
      %s22 = sshll.u32 [#allocation2], 4
      %s23 = int_to_ptr.vmem [resolvable:$true] %s22
      %28 = dma.hbm_to_vmem [thread:$0]  %s21, 256, %s23, [#allocation3], 128, 128, 8
    $region5: #{mlp_forward.1} parent=1 // pred_fallthru
      _
    // Predicated region
    $region6: #{mlp_forward.1} parent=1 // pred_check
      _
    $region7: #{mlp_forward.1} parent=1 // pred_check_branch
      %30 = sbr.rel (0) target = $region9
    $region8: #{mlp_forward.1} parent=1 // pred_region
      %32 = vsyncadd [#allocation6], 0
      %s33 = sshll.u32 %s1, 4
      %s34 = int_to_ptr.hbm [resolvable:$true] %s33
      %s35 = sshll.u32 [#allocation5], 4
      %s36 = int_to_ptr.vmem [resolvable:$true] %s35
      %41 = dma.hbm_to_vmem [thread:$0]  %s34, 512, %s36, [#allocation6], 128, 128, 8
    $region9: #{mlp_forward.1} parent=1 // pred_fallthru
      _
    // Predicated region
    $region10: #{mlp_forward.1} parent=1 // pred_check
      _
    $region11: #{mlp_forward.1} parent=1 // pred_check_branch
      %43 = sbr.rel (0) target = $region13
    $region12: #{mlp_forward.1} parent=1 // pred_region
      _
    $region13: #{mlp_forward.1} parent=1 // pred_fallthru
      _
    // Predicated region
    $region14: #{mlp_forward.1} parent=1 // pred_check
      _
    $region15: #{mlp_forward.1} parent=1 // pred_check_branch
      %45 = sbr.rel (0) target = $region17
    $region16: #{mlp_forward.1} parent=1 // pred_region
      %47 = vsyncadd [#allocation6], 0
      %s48 = sshll.u32 %s3, 4
      %s49 = int_to_ptr.hbm [resolvable:$true] %s48
      %s50 = sshll.u32 [#allocation7], 4
      %s51 = int_to_ptr.vmem [resolvable:$true] %s50
      %56 = dma.hbm_to_vmem [thread:$0]  %s49, 2048, %s51, [#allocation6], 128, 128, 8
    $region17: #{mlp_forward.1} parent=1 // pred_fallthru
      _
    // Predicated region
    $region18: #{mlp_forward.1} parent=1 // pred_check
      _
    $region19: #{mlp_forward.1} parent=1 // pred_check_branch
      %58 = sbr.rel (0) target = $region21
    $region20: #{mlp_forward.1} parent=1 // pred_region
      _
    $region21: #{mlp_forward.1} parent=1 // pred_fallthru
      _
    // Predicated region
    $region22: #{mlp_forward.1} parent=1 // pred_check
      _
    $region23: #{mlp_forward.1} parent=1 // pred_check_branch
      %60 = sbr.rel (0) target = $region25
    $region24: #{mlp_forward.1} parent=1 // pred_region
      %62 = vsyncadd [#allocation9], 0
      %s63 = sshll.u32 %s5, 4
      %s64 = int_to_ptr.hbm [resolvable:$true] %s63
      %s65 = sshll.u32 [#allocation8], 4
      %s66 = int_to_ptr.vmem [resolvable:$true] %s65
      %71 = dma.hbm_to_vmem [thread:$0]  %s64, 2048, %s66, [#allocation9], 128, 128, 8
    $region25: #{mlp_forward.1} parent=1 // pred_fallthru
      _
    // Predicated region
    $region26: #{mlp_forward.1} parent=1 // pred_check
      _
    $region27: #{mlp_forward.1} parent=1 // pred_check_branch
      %73 = sbr.rel (0) target = $region29
    $region28: #{mlp_forward.1} parent=1 // pred_region
      _
    $region29: #{mlp_forward.1} parent=1 // pred_fallthru
      _
    // Predicated region
    $region30: #{mlp_forward.1} parent=1 // pred_check
      _
    $region31: #{mlp_forward.1} parent=1 // pred_check_branch
      %75 = sbr.rel (0) target = $region33
    $region32: #{mlp_forward.1} parent=1 // pred_region
      %77 = dma.done [#allocation3], 256
    $region33: #{mlp_forward.1} parent=1 // pred_fallthru
      _
    // Predicated region
    $region34: #{mlp_forward.1} parent=1 // pred_check
      _
    $region35: #{mlp_forward.1} parent=1 // pred_check_branch
      %79 = sbr.rel (0) target = $region37
    $region36: #{mlp_forward.1} parent=1 // pred_region
      %81 = dma.done [#allocation6], 512
    $region37: #{mlp_forward.1} parent=1 // pred_fallthru
      _
    // Predicated region
    $region38: #{mlp_forward.1} parent=1 // pred_check
      _
    $region39: #{mlp_forward.1} parent=1 // pred_check_branch
      %83 = sbr.rel (0) target = $region41
    $region40: #{mlp_forward.1} parent=1 // pred_region
      %85 = dma.done [#allocation6], 2048
    $region41: #{mlp_forward.1} parent=1 // pred_fallthru
      _
    // Predicated region
    $region42: #{mlp_forward.1} parent=1 // pred_check
      _
    $region43: #{mlp_forward.1} parent=1 // pred_check_branch
      %87 = sbr.rel (0) target = $region45
    $region44: #{mlp_forward.1} parent=1 // pred_region
      %89 = dma.done [#allocation9], 2048
    $region45: #{mlp_forward.1} parent=1 // pred_fallthru
      _
    %v90 = vld [vmem:[#allocation2] sm:$0xff]
    %v91 = vld [vmem:[#allocation2 + $0x8] sm:$0xff]
    %v92 = vld [vmem:[#allocation5] sm:$0xff]
    %v93 = vld [vmem:[#allocation5 + $0x8] sm:$0xff]
    %v94 = vld [vmem:[#allocation5 + $0x10] sm:$0xff]
    %v95 = vld [vmem:[#allocation5 + $0x18] sm:$0xff]
    %v96 = vld [vmem:[%s2] sm:$0x1]
    %v98 = vperm.slane %v96, 0
    %vm100 = vcmask 261120
    %v102 = vsel %vm100, %v90, 0
    %v105 = vsel %vm100, %v91, 0
    %107 = vmatpush.msra.mxu0 0.0
    %108 = vmatpush.msra.mxu0 0.0
    %109 = vmatpush.msra.mxu0 0.0
    %110 = vmatpush.msra.mxu0 0.0
    %111 = vmatpush.msra.mxu0 0.0
    %112 = vmatpush.msra.mxu0 0.0
    %113 = vmatpush.msra.mxu0 0.0
    %114 = vmatpush.msra.mxu0 0.0
    %115 = vmatpush.msra.mxu0 0.0
    %116 = vmatpush.msra.mxu0 0.0
    %117 = vmatpush.msra.mxu0 0.0
    %118 = vmatpush.msra.mxu0 0.0
    %119 = vmatpush.msra.mxu0 %v95
    %120 = vmatpush.msra.mxu0 %v94
    %121 = vmatpush.msra.mxu0 %v93
    %122 = vmatpush.msra.mxu0 %v92
    %123 = vmatmul.f32.gmra.mxu0 %v102
    %v124 = vpop.f32.mrf.mxu0
    %v125 = vadd.f32 %v98, %v124
    %126 = vmatmul.f32.gmra.mxu0 %v105
    %v127 = vpop.f32.mrf.mxu0
    %v128 = vadd.f32 %v98, %v127
    %129 = vdwg.mxu0
    %v130 = vmul.f32 %v125, 0.5
    %v131 = vmul.f32 %v128, 0.5
    %v132 = vmul.f32 %v125, 0.70710677
    %v133 = vmul.f32 %v128, 0.70710677
    %v134 = vmul.f32 %v132, %v132
    %v135 = vmin.f32 16.0, %v134
    %v136 = vmul.f32 %v135, 2.1237322e-06
    %v137 = vadd.f32 %v136, 0.00028619796
    %v138 = vmul.f32 %v135, %v137
    %v139 = vadd.f32 %v138, 0.0036580483
    %v140 = vmul.f32 %v135, %v139
    %v141 = vadd.f32 %v140, 0.05243302
    %v142 = vmul.f32 %v135, %v141
    %v143 = vadd.f32 %v142, 0.18741608
    %v144 = vmul.f32 %v135, %v143
    %v145 = vadd.f32 %v144, 1.1283791
    %v146 = vmul.f32 %v132, %v145
    %v147 = vmul.f32 %v135, 3.8918573e-05
    %v148 = vadd.f32 %v147, 0.001143296
    %v149 = vmul.f32 %v135, %v148
    %v150 = vadd.f32 %v149, 0.014752088
    %v151 = vmul.f32 %v135, %v150
    %v152 = vadd.f32 %v151, 0.112945676
    %v153 = vmul.f32 %v135, %v152
    %v154 = vadd.f32 %v153, 0.4994258
    %v155 = vmul.f32 %v135, %v154
    %v156 = vadd.f32 %v155, 1.0
    %v157 = vrcp.pop %v156
    %v158 = vmul.f32 %v156, %v157
    %v159 = vsub.f32 1.0, %v158
    %v160 = vmul.f32 %v157, %v159
    %v161 = vadd.f32 %v157, %v160
    %vm162 = vweird.f32 %v156
    %vm163 = vweird.f32 %v157
    %vm164 = vmor %vm162, %vm163
    %v165 = vsel %vm164, %v157, %v161
    %v166 = vand.u32 2147483647, %v156
    %vm167 = vcmp.eq.f32.partialorder %v166, 8.507059e+37
    %v168 = vand.u32 %v156, 2147483648
    %v169 = vor.u32 1.1754944e-38, %v168
    %v170 = vsel %vm167, %v169, %v165
    %v171 = vmul.f32 %v146, %v170
    %v172 = vmin.f32 %v171, 1.0
    %v173 = vmax.f32 %v172, -1.0
    %v174 = vmul.f32 %v133, %v133
    %v175 = vmin.f32 16.0, %v174
    %v176 = vmul.f32 %v175, 2.1237322e-06
    %v177 = vadd.f32 %v176, 0.00028619796
    %v178 = vmul.f32 %v175, %v177
    %v179 = vadd.f32 %v178, 0.0036580483
    %v180 = vmul.f32 %v175, %v179
    %v181 = vadd.f32 %v180, 0.05243302
    %v182 = vmul.f32 %v175, %v181
    %v183 = vadd.f32 %v182, 0.18741608
    %v184 = vmul.f32 %v175, %v183
    %v185 = vadd.f32 %v184, 1.1283791
    %v186 = vmul.f32 %v133, %v185
    %v187 = vmul.f32 %v175, 3.8918573e-05
    %v188 = vadd.f32 %v187, 0.001143296
    %v189 = vmul.f32 %v175, %v188
    %v190 = vadd.f32 %v189, 0.014752088
    %v191 = vmul.f32 %v175, %v190
    %v192 = vadd.f32 %v191, 0.112945676
    %v193 = vmul.f32 %v175, %v192
    %v194 = vadd.f32 %v193, 0.4994258
    %v195 = vmul.f32 %v175, %v194
    %v196 = vadd.f32 %v195, 1.0
    %v197 = vrcp.pop %v196
    %v198 = vmul.f32 %v196, %v197
    %v199 = vsub.f32 1.0, %v198
    %v200 = vmul.f32 %v197, %v199
    %v201 = vadd.f32 %v197, %v200
    %vm202 = vweird.f32 %v196
    %vm203 = vweird.f32 %v197
    %vm204 = vmor %vm202, %vm203
    %v205 = vsel %vm204, %v197, %v201
    %v206 = vand.u32 2147483647, %v196
    %vm207 = vcmp.eq.f32.partialorder %v206, 8.507059e+37
    %v208 = vand.u32 %v196, 2147483648
    %v209 = vor.u32 1.1754944e-38, %v208
    %v210 = vsel %vm207, %v209, %v205
    %v211 = vmul.f32 %v186, %v210
    %v212 = vmin.f32 %v211, 1.0
    %v213 = vmax.f32 %v212, -1.0
    %v214 = vadd.f32 %v173, 1.0
    %v215 = vadd.f32 %v213, 1.0
    %v216 = vmul.f32 %v130, %v214
    %v217 = vmul.f32 %v131, %v215
    %v218 = vld [vmem:[#allocation7] sm:$0xff]
    %v219 = vld [vmem:[#allocation7 + $0x8] sm:$0xff]
    %v220 = vld [vmem:[#allocation7 + $0x10] sm:$0xff]
    %v221 = vld [vmem:[#allocation7 + $0x18] sm:$0xff]
    %v222 = vld [vmem:[#allocation7 + $0x20] sm:$0xff]
    %v223 = vld [vmem:[#allocation7 + $0x28] sm:$0xff]
    %v224 = vld [vmem:[#allocation7 + $0x30] sm:$0xff]
    %v225 = vld [vmem:[#allocation7 + $0x38] sm:$0xff]
    %v226 = vld [vmem:[#allocation7 + $0x40] sm:$0xff]
    %v227 = vld [vmem:[#allocation7 + $0x48] sm:$0xff]
    %v228 = vld [vmem:[#allocation7 + $0x50] sm:$0xff]
    %v229 = vld [vmem:[#allocation7 + $0x58] sm:$0xff]
    %v230 = vld [vmem:[#allocation7 + $0x60] sm:$0xff]
    %v231 = vld [vmem:[#allocation7 + $0x68] sm:$0xff]
    %v232 = vld [vmem:[#allocation7 + $0x70] sm:$0xff]
    %v233 = vld [vmem:[#allocation7 + $0x78] sm:$0xff]
    %v234 = vld [vmem:[%s4] sm:$0x1]
    %v236 = vperm.slane %v234, 0
    %238 = vmatpush.msra.mxu0 %v233
    %239 = vmatpush.msra.mxu0 %v232
    %240 = vmatpush.msra.mxu0 %v231
    %241 = vmatpush.msra.mxu0 %v230
    %242 = vmatpush.msra.mxu0 %v229
    %243 = vmatpush.msra.mxu0 %v228
    %244 = vmatpush.msra.mxu0 %v227
    %245 = vmatpush.msra.mxu0 %v226
    %246 = vmatpush.msra.mxu0 %v225
    %247 = vmatpush.msra.mxu0 %v224
    %248 = vmatpush.msra.mxu0 %v223
    %249 = vmatpush.msra.mxu0 %v222
    %250 = vmatpush.msra.mxu0 %v221
    %251 = vmatpush.msra.mxu0 %v220
    %252 = vmatpush.msra.mxu0 %v219
    %253 = vmatpush.msra.mxu0 %v218
    %254 = vmatmul.f32.gmra.mxu0 %v216
    %v255 = vpop.f32.mrf.mxu0
    %v256 = vadd.f32 %v236, %v255
    %257 = vmatmul.f32.gmra.mxu0 %v217
    %v258 = vpop.f32.mrf.mxu0
    %v259 = vadd.f32 %v236, %v258
    %260 = vdwg.mxu0
    %v261 = vmul.f32 %v256, 0.5
    %v262 = vmul.f32 %v259, 0.5
    %v263 = vmul.f32 %v256, 0.70710677
    %v264 = vmul.f32 %v259, 0.70710677
    %v265 = vmul.f32 %v263, %v263
    %v266 = vmin.f32 16.0, %v265
    %v267 = vmul.f32 %v266, 2.1237322e-06
    %v268 = vadd.f32 %v267, 0.00028619796
    %v269 = vmul.f32 %v266, %v268
    %v270 = vadd.f32 %v269, 0.0036580483
    %v271 = vmul.f32 %v266, %v270
    %v272 = vadd.f32 %v271, 0.05243302
    %v273 = vmul.f32 %v266, %v272
    %v274 = vadd.f32 %v273, 0.18741608
    %v275 = vmul.f32 %v266, %v274
    %v276 = vadd.f32 %v275, 1.1283791
    %v277 = vmul.f32 %v263, %v276
    %v278 = vmul.f32 %v266, 3.8918573e-05
    %v279 = vadd.f32 %v278, 0.001143296
    %v280 = vmul.f32 %v266, %v279
    %v281 = vadd.f32 %v280, 0.014752088
    %v282 = vmul.f32 %v266, %v281
    %v283 = vadd.f32 %v282, 0.112945676
    %v284 = vmul.f32 %v266, %v283
    %v285 = vadd.f32 %v284, 0.4994258
    %v286 = vmul.f32 %v266, %v285
    %v287 = vadd.f32 %v286, 1.0
    %v288 = vrcp.pop %v287
    %v289 = vmul.f32 %v287, %v288
    %v290 = vsub.f32 1.0, %v289
    %v291 = vmul.f32 %v288, %v290
    %v292 = vadd.f32 %v288, %v291
    %vm293 = vweird.f32 %v287
    %vm294 = vweird.f32 %v288
    %vm295 = vmor %vm293, %vm294
    %v296 = vsel %vm295, %v288, %v292
    %v297 = vand.u32 2147483647, %v287
    %vm298 = vcmp.eq.f32.partialorder %v297, 8.507059e+37
    %v299 = vand.u32 %v287, 2147483648
    %v300 = vor.u32 1.1754944e-38, %v299
    %v301 = vsel %vm298, %v300, %v296
    %v302 = vmul.f32 %v277, %v301
    %v303 = vmin.f32 %v302, 1.0
    %v304 = vmax.f32 %v303, -1.0
    %v305 = vmul.f32 %v264, %v264
    %v306 = vmin.f32 16.0, %v305
    %v307 = vmul.f32 %v306, 2.1237322e-06
    %v308 = vadd.f32 %v307, 0.00028619796
    %v309 = vmul.f32 %v306, %v308
    %v310 = vadd.f32 %v309, 0.0036580483
    %v311 = vmul.f32 %v306, %v310
    %v312 = vadd.f32 %v311, 0.05243302
    %v313 = vmul.f32 %v306, %v312
    %v314 = vadd.f32 %v313, 0.18741608
    %v315 = vmul.f32 %v306, %v314
    %v316 = vadd.f32 %v315, 1.1283791
    %v317 = vmul.f32 %v264, %v316
    %v318 = vmul.f32 %v306, 3.8918573e-05
    %v319 = vadd.f32 %v318, 0.001143296
    %v320 = vmul.f32 %v306, %v319
    %v321 = vadd.f32 %v320, 0.014752088
    %v322 = vmul.f32 %v306, %v321
    %v323 = vadd.f32 %v322, 0.112945676
    %v324 = vmul.f32 %v306, %v323
    %v325 = vadd.f32 %v324, 0.4994258
    %v326 = vmul.f32 %v306, %v325
    %v327 = vadd.f32 %v326, 1.0
    %v328 = vrcp.pop %v327
    %v329 = vmul.f32 %v327, %v328
    %v330 = vsub.f32 1.0, %v329
    %v331 = vmul.f32 %v328, %v330
    %v332 = vadd.f32 %v328, %v331
    %vm333 = vweird.f32 %v327
    %vm334 = vweird.f32 %v328
    %vm335 = vmor %vm333, %vm334
    %v336 = vsel %vm335, %v328, %v332
    %v337 = vand.u32 2147483647, %v327
    %vm338 = vcmp.eq.f32.partialorder %v337, 8.507059e+37
    %v339 = vand.u32 %v327, 2147483648
    %v340 = vor.u32 1.1754944e-38, %v339
    %v341 = vsel %vm338, %v340, %v336
    %v342 = vmul.f32 %v317, %v341
    %v343 = vmin.f32 %v342, 1.0
    %v344 = vmax.f32 %v343, -1.0
    %v345 = vadd.f32 %v304, 1.0
    %v346 = vadd.f32 %v344, 1.0
    %v347 = vmul.f32 %v261, %v345
    %v348 = vmul.f32 %v262, %v346
    %v349 = vld [vmem:[#allocation8] sm:$0xff]
    %v350 = vld [vmem:[#allocation8 + $0x8] sm:$0xff]
    %v351 = vld [vmem:[#allocation8 + $0x10] sm:$0xff]
    %v352 = vld [vmem:[#allocation8 + $0x18] sm:$0xff]
    %v353 = vld [vmem:[#allocation8 + $0x20] sm:$0xff]
    %v354 = vld [vmem:[#allocation8 + $0x28] sm:$0xff]
    %v355 = vld [vmem:[#allocation8 + $0x30] sm:$0xff]
    %v356 = vld [vmem:[#allocation8 + $0x38] sm:$0xff]
    %v357 = vld [vmem:[#allocation8 + $0x40] sm:$0xff]
    %v358 = vld [vmem:[#allocation8 + $0x48] sm:$0xff]
    %v359 = vld [vmem:[#allocation8 + $0x50] sm:$0xff]
    %v360 = vld [vmem:[#allocation8 + $0x58] sm:$0xff]
    %v361 = vld [vmem:[#allocation8 + $0x60] sm:$0xff]
    %v362 = vld [vmem:[#allocation8 + $0x68] sm:$0xff]
    %v363 = vld [vmem:[#allocation8 + $0x70] sm:$0xff]
    %v364 = vld [vmem:[#allocation8 + $0x78] sm:$0xff]
    %v365 = vld [vmem:[%s6] sm:$0x1]
    %v367 = vperm.slane %v365, 0
    %369 = vmatpush.msra.mxu0 %v364
    %370 = vmatpush.msra.mxu0 %v363
    %371 = vmatpush.msra.mxu0 %v362
    %372 = vmatpush.msra.mxu0 %v361
    %373 = vmatpush.msra.mxu0 %v360
    %374 = vmatpush.msra.mxu0 %v359
    %375 = vmatpush.msra.mxu0 %v358
    %376 = vmatpush.msra.mxu0 %v357
    %377 = vmatpush.msra.mxu0 %v356
    %378 = vmatpush.msra.mxu0 %v355
    %379 = vmatpush.msra.mxu0 %v354
    %380 = vmatpush.msra.mxu0 %v353
    %381 = vmatpush.msra.mxu0 %v352
    %382 = vmatpush.msra.mxu0 %v351
    %383 = vmatpush.msra.mxu0 %v350
    %384 = vmatpush.msra.mxu0 %v349
    %385 = vmatmul.f32.gmra.mxu0 %v347
    %v386 = vpop.f32.mrf.mxu0
    %v387 = vadd.f32 %v367, %v386
    %388 = vmatmul.f32.gmra.mxu0 %v348
    %v389 = vpop.f32.mrf.mxu0
    %v390 = vadd.f32 %v367, %v389
    %391 = vdwg.mxu0
    %392 = vst [vmem:[#allocation10] sm:$0xff] %v387
    %393 = vst [vmem:[#allocation10 + $0x8] sm:$0xff] %v390
    // Predicated region
    $region46: #{mlp_forward.1} parent=1 // pred_check
      _
    $region47: #{mlp_forward.1} parent=1 // pred_check_branch
      %395 = sbr.rel (0) target = $region49
    $region48: #{mlp_forward.1} parent=1 // pred_region
      %397 = vsyncadd [#allocation4], 0
      %s398 = sshll.u32 [#allocation10], 4
      %s399 = int_to_ptr.vmem [resolvable:$true] %s398
      %s400 = sshll.u32 %s7, 4
      %s401 = int_to_ptr.hbm [resolvable:$true] %s400
      %406 = dma.vmem_to_hbm [thread:$0]  %s399, 256, %s401, [#allocation4], 128, 128, 8
    $region49: #{mlp_forward.1} parent=1 // pred_fallthru
      _
    // Predicated region
    $region50: #{mlp_forward.1} parent=1 // pred_check
      _
    $region51: #{mlp_forward.1} parent=1 // pred_check_branch
      %408 = sbr.rel (0) target = $region53
    $region52: #{mlp_forward.1} parent=1 // pred_region
      %410 = dma.done [#allocation4], 256
    $region53: #{mlp_forward.1} parent=1 // pred_fallthru
      _
    %411 = vsyncpa [#allocation3], 1
    %412 = vsyncpa [#allocation6], 1
    %413 = vsyncpa [#allocation9], 1
    %414 = vsyncpa [#allocation4], 1

</llo_original>
